<compile_context>
chip_gen: v6e
topology: v6e:2x2x1
jax: 0.10.0
libtpu: 0.0.40
codegen_flags: <defaults>
</compile_context>

<pallas_src>
import jax
import jax.numpy as jnp
from jax import lax
from jax.experimental import pallas as pl
from jax.experimental.pallas import tpu as pltpu


def cbow_kernel(summed_ref, w_ref, b_ref, out_ref, logits_ref, m_ref, l_ref):
    # summed_ref : (tb, D)        context-summed embeddings (compute dtype)
    # w_ref      : (tv, D)        linear-weight tile, PyTorch (V, D) layout (compute dtype)
    # b_ref      : (nv, 1, tv)    bias, f32, fully resident
    # out_ref    : (tb, tv)       f32 log-prob tile
    # logits_ref : (nv, tb, tv)   f32 scratch caching this batch tile's full logits row
    # m_ref/l_ref: (tb, 1)        f32 running max / running sum-exp
    p = pl.program_id(1)   # pass: 0 = matmul + online stats, 1 = normalize & write
    j = pl.program_id(2)   # vocab tile

    @pl.when((p == 0) & (j == 0))
    def _init():
        m_ref[...] = jnp.full(m_ref.shape, -jnp.inf, jnp.float32)
        l_ref[...] = jnp.zeros(l_ref.shape, jnp.float32)

    @pl.when(p == 0)
    def _stats():
        # (tb, D) x (tv, D) contracting D on the MXU; f32 accumulation.
        logits = lax.dot_general(
            summed_ref[...], w_ref[...],
            dimension_numbers=(((1,), (1,)), ((), ())),
            preferred_element_type=jnp.float32)
        logits = logits + b_ref[j]            # (1, tv) broadcast
        logits_ref[j] = logits                # cache; pass 1 does NOT redo the matmul
        m_prev = m_ref[...]
        m_new = jnp.maximum(m_prev, jnp.max(logits, axis=1, keepdims=True))
        l_ref[...] = (l_ref[...] * jnp.exp(m_prev - m_new)
                      + jnp.sum(jnp.exp(logits - m_new), axis=1, keepdims=True))
        m_ref[...] = m_new

    @pl.when(p == 1)
    def _write():
        out_ref[...] = logits_ref[j] - m_ref[...] - jnp.log(l_ref[...])


def cbow_forward(x, emb, w, b, *, tb=None, tv=None, compute_dtype=jnp.float32):
    """x: (B, C) int indices; emb: (V, D); w: (V, D) (nn.Linear layout); b: (V,).

    compute_dtype=jnp.bfloat16 halves W/summed HBM traffic (perf-review item);
    float32 (default) reproduces the PyTorch forward exactly.
    """
    B, C = x.shape
    V, D = emb.shape
    assert w.shape == (V, D) and b.shape == (V,)
    assert V % 128 == 0, "vocab size must be a multiple of 128 for lane-dense tiles"

    # --- Embedding gather + sum over context in plain XLA (keeps the table out
    #     of VMEM; O(B*C*D) work, negligible next to the (B,D)x(D,V) matmul).
    summed = jnp.sum(jnp.take(emb, x.astype(jnp.int32), axis=0), axis=1)  # (B, D)

    # --- Tile sizes: lane-dense vocab tiles up to 2048; batch tiles up to 128.
    if tv is None:
        for cand in (2048, 1024, 512, 256, 128):
            if V % cand == 0:
                tv = cand
                break
    assert V % tv == 0 and tv % 128 == 0
    if tb is None:
        tb = min(B, 128)
    assert B % tb == 0 and (tb % 8 == 0 or tb == B)
    nb, nv = B // tb, V // tv

    summed_c = summed.astype(compute_dtype)
    w_c = w.astype(compute_dtype)
    b3 = b.astype(jnp.float32).reshape(nv, 1, tv)   # contiguous vocab chunks per tile

    in_bytes = jnp.dtype(compute_dtype).itemsize

    # --- VMEM budget (double-buffered inputs/outputs + resident scratch) + headroom.
    vmem_needed = (2 * tb * D * in_bytes          # summed tiles
                   + 2 * tv * D * in_bytes        # W tiles
                   + 2 * nv * tv * 4              # bias (resident)
                   + 2 * tb * tv * 4              # out tiles
                   + nv * tb * tv * 4             # logits scratch (tb * V)
                   + 4 * tb * 4)                  # m, l
    vmem_limit = int(min(max(vmem_needed + (16 << 20), 32 << 20), 100 << 20))

    # Single matmul pass (pass 1 reuses cached logits).
    cost = pl.CostEstimate(
        flops=2 * B * V * D,
        transcendentals=B * V + B * nv,
        bytes_accessed=(B * D * in_bytes            # summed (once per batch tile)
                        + nb * V * D * in_bytes     # W (once per batch tile)
                        + V * 4                     # bias (once)
                        + B * V * 4))               # output

    return pl.pallas_call(
        cbow_kernel,
        out_shape=jax.ShapeDtypeStruct((B, V), jnp.float32),
        grid_spec=pltpu.PrefetchScalarGridSpec(
            num_scalar_prefetch=0,
            grid=(nb, 2, nv),                       # (batch tile, pass, vocab tile)
            in_specs=[
                # summed: fetched once per batch tile (index constant over p, j).
                pl.BlockSpec((tb, D), lambda bi, p, j: (bi, 0)),
                # W: streamed over j in pass 0 only; frozen at its last block in
                # pass 1 so no second W stream / no refetch.
                pl.BlockSpec((tv, D),
                             lambda bi, p, j: (j * (1 - p) + (nv - 1) * p, 0)),
                # bias: fully resident.
                pl.BlockSpec((nv, 1, tv), lambda bi, p, j: (0, 0, 0)),
            ],
            # Output block index only advances right after the block is written
            # in pass 1 -> no uninitialized write-backs during pass 0.
            out_specs=pl.BlockSpec((tb, tv), lambda bi, p, j: (bi, j * p)),
            scratch_shapes=[
                pltpu.VMEM((nv, tb, tv), jnp.float32),   # cached logits row
                pltpu.VMEM((tb, 1), jnp.float32),        # running max
                pltpu.VMEM((tb, 1), jnp.float32),        # running sum-exp
            ]),
        compiler_params=pltpu.CompilerParams(
            dimension_semantics=("parallel", "arbitrary", "arbitrary"),
            vmem_limit_bytes=vmem_limit),
        cost_estimate=cost,
    )(summed_c, w_c, b3)


if __name__ == "__main__":
    # Small shapes consistent with the module's forward.
    vocab_size = 128
    embedding_dim = 32
    batch = 8
    context = 4

    key = jax.random.PRNGKey(0)
    k_idx, k_emb, k_w, k_b = jax.random.split(key, 4)

    # Deterministic parameter init (matching PyTorch default distributions):
    #   nn.Embedding -> N(0, 1); nn.Linear -> U(-1/sqrt(in), 1/sqrt(in))
    emb = jax.random.normal(k_emb, (vocab_size, embedding_dim), jnp.float32)
    bound = 1.0 / (embedding_dim ** 0.5)
    w = jax.random.uniform(k_w, (vocab_size, embedding_dim), jnp.float32,
                           minval=-bound, maxval=bound)
    b = jax.random.uniform(k_b, (vocab_size,), jnp.float32,
                           minval=-bound, maxval=bound)
    x = jax.random.randint(k_idx, (batch, context), 0, vocab_size, jnp.int32)

    out = cbow_forward(x, emb, w, b)            # f32 path: exact module semantics
    out = jax.block_until_ready(out)

    # Reference: embedding gather + sum + linear + log_softmax in plain JAX.
    ref_summed = jnp.sum(emb[x], axis=1)
    ref = jax.nn.log_softmax(ref_summed @ w.T + b, axis=1)
    assert out.shape == (batch, vocab_size)
    assert jnp.allclose(out, ref, atol=1e-4, rtol=1e-4), "mismatch vs reference"

    print("KERNEL_OK")
</pallas_src>

<mosaic_0001>
module attributes {stable_mosaic.version = 11 : i64} {
  func.func @cbow_kernel(%arg0: i32, %arg1: i32, %arg2: i32, %arg3: memref<8x32xf32, #tpu.memory_space<vmem>>, %arg4: memref<128x32xf32, #tpu.memory_space<vmem>>, %arg5: memref<1x1x128xf32, #tpu.memory_space<vmem>>, %arg6: memref<8x128xf32, #tpu.memory_space<vmem>>, %arg7: memref<1x8x128xf32, #tpu.memory_space<vmem>>, %arg8: memref<8x1xf32, #tpu.memory_space<vmem>>, %arg9: memref<8x1xf32, #tpu.memory_space<vmem>>) attributes {dimension_semantics = [#tpu.dimension_semantics<parallel>, #tpu.dimension_semantics<arbitrary>, #tpu.dimension_semantics<arbitrary>], iteration_bounds = array<i64: 1, 2, 1>, scalar_prefetch = 0 : i64, scratch_operands = 3 : i64, tpu.core_type = #tpu.core_type<tc>, window_params = [{transform_indices = @transform_0, window_bounds = array<i64: 8, 32>}, {transform_indices = @transform_1, window_bounds = array<i64: 128, 32>}, {pipeline_mode = #tpu.pipeline_mode<synchronous>, transform_indices = @transform_2, window_bounds = array<i64: 1, 1, 128>}, {transform_indices = @transform_3, window_bounds = array<i64: 8, 128>}]} {
    %c0_i32 = arith.constant 0 : i32
    %0 = arith.cmpi eq, %arg1, %c0_i32 : i32
    %c0_i32_0 = arith.constant 0 : i32
    %1 = arith.cmpi eq, %arg2, %c0_i32_0 : i32
    %2 = arith.andi %0, %1 : i1
    %3 = arith.extui %2 : i1 to i32
    %c0_i32_1 = arith.constant 0 : i32
    %4 = arith.cmpi ne, %3, %c0_i32_1 : i32
    scf.if %4 {
      %cst = arith.constant 0xFF800000 : f32
      %11 = vector.broadcast %cst : f32 to vector<8x1xf32>
      %c0 = arith.constant 0 : index
      %c0_5 = arith.constant 0 : index
      %12 = vector.load %arg8[%c0, %c0_5] : memref<8x1xf32, #tpu.memory_space<vmem>>, vector<8x1xf32>
      tpu.vector_store %arg8[%c0, %c0_5], %11 {strides = array<i32>} : memref<8x1xf32, #tpu.memory_space<vmem>>, vector<8x1xf32>,
      %cst_6 = arith.constant 0.000000e+00 : f32
      %13 = vector.broadcast %cst_6 : f32 to vector<8x1xf32>
      %c0_7 = arith.constant 0 : index
      %c0_8 = arith.constant 0 : index
      %14 = vector.load %arg9[%c0_7, %c0_8] : memref<8x1xf32, #tpu.memory_space<vmem>>, vector<8x1xf32>
      tpu.vector_store %arg9[%c0_7, %c0_8], %13 {strides = array<i32>} : memref<8x1xf32, #tpu.memory_space<vmem>>, vector<8x1xf32>,
    } else {
    }
    %c0_i32_2 = arith.constant 0 : i32
    %5 = arith.cmpi eq, %arg1, %c0_i32_2 : i32
    %6 = arith.extui %5 : i1 to i32
    %c0_i32_3 = arith.constant 0 : i32
    %7 = arith.cmpi ne, %6, %c0_i32_3 : i32
    scf.if %7 {
      %c0 = arith.constant 0 : index
      %c0_5 = arith.constant 0 : index
      %11 = vector.load %arg3[%c0, %c0_5] : memref<8x32xf32, #tpu.memory_space<vmem>>, vector<8x32xf32>
      %c0_6 = arith.constant 0 : index
      %c0_7 = arith.constant 0 : index
      %12 = vector.load %arg4[%c0_6, %c0_7] : memref<128x32xf32, #tpu.memory_space<vmem>>, vector<128x32xf32>
      %cst = arith.constant dense<0.000000e+00> : vector<8x128xf32>
      %13 = tpu.matmul %11, %12, %cst {dimension_numbers = #tpu.dot_dimension_numbers<[1], [1], [0], [0], [0, 0, 1, 0], [], []>} : vector<8x32xf32>, vector<128x32xf32>, vector<8x128xf32> -> vector<8x128xf32>
      %14 = arith.index_cast %arg2 : i32 to index
      %c0_8 = arith.constant 0 : index
      %c0_9 = arith.constant 0 : index
      %15 = vector.load %arg5[%14, %c0_8, %c0_9] : memref<1x1x128xf32, #tpu.memory_space<vmem>>, vector<1x1x128xf32>
      %16 = vector.shape_cast %15 : vector<1x1x128xf32> to vector<1x128xf32>
      %17 = vector.broadcast %16 : vector<1x128xf32> to vector<8x128xf32>
      %18 = arith.addf %13, %17 : vector<8x128xf32>
      %19 = arith.index_cast %arg2 : i32 to index
      %c0_10 = arith.constant 0 : index
      %c0_11 = arith.constant 0 : index
      %20 = vector.load %arg7[%19, %c0_10, %c0_11] : memref<1x8x128xf32, #tpu.memory_space<vmem>>, vector<1x8x128xf32>
      %21 = vector.shape_cast %20 : vector<1x8x128xf32> to vector<8x128xf32>
      %22 = vector.shape_cast %18 : vector<8x128xf32> to vector<1x8x128xf32>
      tpu.vector_store %arg7[%19, %c0_10, %c0_11], %22 {strides = array<i32>} : memref<1x8x128xf32, #tpu.memory_space<vmem>>, vector<1x8x128xf32>,
      %c0_12 = arith.constant 0 : index
      %c0_13 = arith.constant 0 : index
      %23 = vector.load %arg8[%c0_12, %c0_13] : memref<8x1xf32, #tpu.memory_space<vmem>>, vector<8x1xf32>
      %cst_14 = arith.constant dense<0xFF800000> : vector<8xf32>
      %24 = vector.multi_reduction <maximumf>, %18, %cst_14 [1] : vector<8x128xf32> to vector<8xf32>
      %25 = vector.shape_cast %24 : vector<8xf32> to vector<8x1xf32>
      %26 = arith.maximumf %23, %25 : vector<8x1xf32>
      %c0_15 = arith.constant 0 : index
      %c0_16 = arith.constant 0 : index
      %27 = vector.load %arg9[%c0_15, %c0_16] : memref<8x1xf32, #tpu.memory_space<vmem>>, vector<8x1xf32>
      %28 = arith.subf %23, %26 : vector<8x1xf32>
      %29 = math.exp %28 : vector<8x1xf32>
      %30 = arith.mulf %27, %29 : vector<8x1xf32>
      %31 = vector.broadcast %26 : vector<8x1xf32> to vector<8x128xf32>
      %32 = arith.subf %18, %31 : vector<8x128xf32>
      %33 = math.exp %32 : vector<8x128xf32>
      %cst_17 = arith.constant dense<0.000000e+00> : vector<8xf32>
      %34 = vector.multi_reduction <add>, %33, %cst_17 [1] : vector<8x128xf32> to vector<8xf32>
      %35 = vector.shape_cast %34 : vector<8xf32> to vector<8x1xf32>
      %36 = arith.addf %30, %35 : vector<8x1xf32>
      %c0_18 = arith.constant 0 : index
      %c0_19 = arith.constant 0 : index
      %37 = vector.load %arg9[%c0_18, %c0_19] : memref<8x1xf32, #tpu.memory_space<vmem>>, vector<8x1xf32>
      tpu.vector_store %arg9[%c0_18, %c0_19], %36 {strides = array<i32>} : memref<8x1xf32, #tpu.memory_space<vmem>>, vector<8x1xf32>,
      %c0_20 = arith.constant 0 : index
      %c0_21 = arith.constant 0 : index
      %38 = vector.load %arg8[%c0_20, %c0_21] : memref<8x1xf32, #tpu.memory_space<vmem>>, vector<8x1xf32>
      tpu.vector_store %arg8[%c0_20, %c0_21], %26 {strides = array<i32>} : memref<8x1xf32, #tpu.memory_space<vmem>>, vector<8x1xf32>,
    } else {
    }
    %c1_i32 = arith.constant 1 : i32
    %8 = arith.cmpi eq, %arg1, %c1_i32 : i32
    %9 = arith.extui %8 : i1 to i32
    %c0_i32_4 = arith.constant 0 : i32
    %10 = arith.cmpi ne, %9, %c0_i32_4 : i32
    scf.if %10 {
      %11 = arith.index_cast %arg2 : i32 to index
      %c0 = arith.constant 0 : index
      %c0_5 = arith.constant 0 : index
      %12 = vector.load %arg7[%11, %c0, %c0_5] : memref<1x8x128xf32, #tpu.memory_space<vmem>>, vector<1x8x128xf32>
      %13 = vector.shape_cast %12 : vector<1x8x128xf32> to vector<8x128xf32>
      %c0_6 = arith.constant 0 : index
      %c0_7 = arith.constant 0 : index
      %14 = vector.load %arg8[%c0_6, %c0_7] : memref<8x1xf32, #tpu.memory_space<vmem>>, vector<8x1xf32>
      %15 = vector.broadcast %14 : vector<8x1xf32> to vector<8x128xf32>
      %16 = arith.subf %13, %15 : vector<8x128xf32>
      %c0_8 = arith.constant 0 : index
      %c0_9 = arith.constant 0 : index
      %17 = vector.load %arg9[%c0_8, %c0_9] : memref<8x1xf32, #tpu.memory_space<vmem>>, vector<8x1xf32>
      %18 = math.log %17 : vector<8x1xf32>
      %19 = vector.broadcast %18 : vector<8x1xf32> to vector<8x128xf32>
      %20 = arith.subf %16, %19 : vector<8x128xf32>
      %c0_10 = arith.constant 0 : index
      %c0_11 = arith.constant 0 : index
      %21 = vector.load %arg6[%c0_10, %c0_11] : memref<8x128xf32, #tpu.memory_space<vmem>>, vector<8x128xf32>
      tpu.vector_store %arg6[%c0_10, %c0_11], %20 {strides = array<i32>} : memref<8x128xf32, #tpu.memory_space<vmem>>, vector<8x128xf32>,
    } else {
    }
    return
  }
  func.func @transform_0(%arg0: i32, %arg1: i32, %arg2: i32) -> (i32, i32) {
    %c0_i32 = arith.constant 0 : i32
    %c0_i32_0 = arith.constant 0 : i32
    return %arg0, %c0_i32 : i32, i32
  }
  func.func @transform_1(%arg0: i32, %arg1: i32, %arg2: i32) -> (i32, i32) {
    %c1_i32 = arith.constant 1 : i32
    %0 = arith.subi %c1_i32, %arg1 : i32
    %1 = arith.muli %arg2, %0 : i32
    %c0_i32 = arith.constant 0 : i32
    %2 = arith.muli %c0_i32, %arg1 : i32
    %3 = arith.addi %1, %2 : i32
    %c0_i32_0 = arith.constant 0 : i32
    %c0_i32_1 = arith.constant 0 : i32
    return %3, %c0_i32_0 : i32, i32
  }
  func.func @transform_2(%arg0: i32, %arg1: i32, %arg2: i32) -> (i32, i32, i32) {
    %c0_i32 = arith.constant 0 : i32
    %c0_i32_0 = arith.constant 0 : i32
    %c0_i32_1 = arith.constant 0 : i32
    %c0_i32_2 = arith.constant 0 : i32
    return %c0_i32, %c0_i32_0, %c0_i32_1 : i32, i32, i32
  }
  func.func @transform_3(%arg0: i32, %arg1: i32, %arg2: i32) -> (i32, i32) {
    %0 = arith.muli %arg2, %arg1 : i32
    %c0_i32 = arith.constant 0 : i32
    return %arg0, %0 : i32, i32
  }
}

</mosaic_0001>

<llo_original>
// kernel: tpu_custom_call.1
$region0: #{tpu_custom_call.1}
  #allocation0 [shape = 'u32[]', space=smem, size = 0x4, offset = 0x4, fixed_abs, tag = 'smem constant byte address 0x4 - core index']
  #allocation1 [shape = 'u32[144,128]{1,0:T(1,128)}', space=vmem, size = 0x12000, scoped, tag = 'internal scratch']
  #allocation2 [shape = 'f32[1,8,128]{2,1,0:T(8,128)}', space=vmem, size = 0x1000, scoped, tag = 'scratch operand']
  #allocation3 [shape = 'f32[8,1]{1,0:T(8,128)}', space=vmem, size = 0x1000, scoped, tag = 'scratch operand']
  #allocation4 [shape = 'f32[8,1]{1,0:T(8,128)}', space=vmem, size = 0x1000, scoped, tag = 'scratch operand']
  %s0 = inlined_call_operand.vmem [shape: f32[8,32], index: 0, kind: input, shape index: {}]
  %s1 = inlined_call_operand.vmem [shape: f32[128,32], index: 1, kind: input, shape index: {}]
  %s2 = inlined_call_operand.vmem [shape: f32[1,1,128], index: 2, kind: input, shape index: {}]
  %s3 = inlined_call_operand.hbm [shape: f32[8,128], index: 3, kind: output, shape index: {}]
  %s4 = sld [smem:[#allocation0]]
  $region57: #{tpu_custom_call.1} parent=0
    _
  %s6 = ssub.s32 1, %s4
  %s7 = scalar_select 0, %s6, %s4
  $region1: #{tpu_custom_call.1} parent=0
    #allocation5 [shape = 'u8[8192]{0}', space=vmem, size = 0x2000, scoped, tag = 'output window, operand 0']
    #allocation6 [shape = 's32[2]{0}', space=sflag, size = 0x8, scoped, tag = 'scoped memory for tpu_custom_call.1']
    %8 = vsyncpa [#allocation6], 0
    %s9 = scalar_lea.sflag [#allocation6], 1
    %10 = vsyncpa %s9, 0
    loop: start=0, step=1, limit=4
    $region2: #{tpu_custom_call.1} parent=1 // loop_pre_header
      _
    $region3: #{tpu_custom_call.1} parent=1 // loop_header
      %s12 = sphi 0, %s16
      %p13 = scmp.ge.s32.totalorder %s12, 4
      %s19 = sphi 0, %s38
      %s20 = sphi 0, %s34
      %s21 = sphi 0, %s30
      %s22 = sphi 0, %s19
      %s23 = sphi 0, %s20
      %s24 = sphi 0, %s21
      %s25 = sphi 0, %s22
      %s26 = sphi 0, %s23
      %s27 = sphi 0, %s24
      %s41 = sphi 0, %s43
      %s44 = sphi 0, %s41
      %s45 = sphi 0, %s44
      %s61 = sphi 0, %s45
      %s71 = sphi 0, %s73
      %s74 = sphi 0, %s71
      %s75 = sphi 0, %s74
      %s91 = sphi 0, %s75
      %s95 = sphi 0, %s95
      %s97 = sphi 0, %s95
      %s98 = sphi 0, %s97
      %s112 = sphi 0, %s98
      %s122 = sphi 0, %s124
      %s125 = sphi 0, %s122
      %s126 = sphi 0, %s125
      %s142 = sphi 0, %s126
    $region4: #{tpu_custom_call.1} parent=1 // loop_header_branch
      %15 = sbr.rel (%p13) target = $region8
    $region5: #{tpu_custom_call.1} parent=1 // loop_body
      %s17 = ssub.s32 %s12, 1
      %s18 = ssub.s32 %s12, 2
      %s28 = sadd.s32 1, %s21
      %p29 = scmp.ge.s32.totalorder %s28, 1
      %s30 = scalar_select %p29, 0, %s28
      %s31 = sadd.s32 1, %s20
      %s32 = scalar_select %p29, %s31, %s20
      %p33 = scmp.ge.s32.totalorder %s32, 2
      %s34 = scalar_select %p33, 0, %s32
      %s35 = sadd.s32 1, %s19
      %s36 = scalar_select %p33, %s35, %s19
      %p37 = scmp.ge.s32.totalorder %s36, 1
      %s38 = scalar_select %p37, 0, %s36
      %s39 = ssub.s32 %s19, %s38
      %p40 = scmp.eq.s32.totalorder %s39, 0
      %s42 = sadd.s32 %s41, 1
      %s43 = scalar_select %p40, %s41, %s42
      %p46 = pneg %p40
      %p47 = scmp.eq.s32.totalorder %s12, 1
      %p48 = por %p46, %p47
      %p49 = scmp.ne.s32.totalorder %s41, %s44
      %p50 = scmp.eq.s32.totalorder %s12, 0
      %p51 = por %p49, %p50
      %p52 = scmp.ne.s32.totalorder %s41, %s44
      %p53 = scmp.eq.s32.totalorder %s17, 1
      %p54 = por %p52, %p53
      %p55 = scmp.ne.s32.totalorder %s44, %s45
      %p56 = scmp.eq.s32.totalorder %s17, 0
      %p57 = por %p55, %p56
      %p58 = scmp.ne.s32.totalorder %s44, %s45
      %p59 = scmp.eq.s32.totalorder %s18, 1
      %p60 = por %p58, %p59
      %p62 = scmp.ne.s32.totalorder %s45, %s61
      %p63 = scmp.eq.s32.totalorder %s18, 0
      %p64 = por %p62, %p63
      %s65 = ssub.s32 1, %s20
      %s66 = smul.u32 %s21, %s65
      %s67 = ssub.s32 1, %s34
      %s68 = smul.u32 %s30, %s67
      %s69 = ssub.s32 %s66, %s68
      %p70 = scmp.eq.s32.totalorder %s69, 0
      %s72 = sadd.s32 %s71, 1
      %s73 = scalar_select %p70, %s71, %s72
      %p76 = pneg %p70
      %p77 = scmp.eq.s32.totalorder %s12, 1
      %p78 = por %p76, %p77
      %p79 = scmp.ne.s32.totalorder %s71, %s74
      %p80 = scmp.eq.s32.totalorder %s12, 0
      %p81 = por %p79, %p80
      %p82 = scmp.ne.s32.totalorder %s71, %s74
      %p83 = scmp.eq.s32.totalorder %s17, 1
      %p84 = por %p82, %p83
      %p85 = scmp.ne.s32.totalorder %s74, %s75
      %p86 = scmp.eq.s32.totalorder %s17, 0
      %p87 = por %p85, %p86
      %p88 = scmp.ne.s32.totalorder %s74, %s75
      %p89 = scmp.eq.s32.totalorder %s18, 1
      %p90 = por %p88, %p89
      %p92 = scmp.ne.s32.totalorder %s75, %s91
      %p93 = scmp.eq.s32.totalorder %s18, 0
      %p94 = por %p92, %p93
      %s96 = sadd.s32 %s95, 1
      %p99 = scmp.eq.s32.totalorder %s12, 1
      %p100 = scmp.ne.s32.totalorder %s95, %s97
      %p101 = scmp.eq.s32.totalorder %s12, 0
      %p102 = por %p100, %p101
      %p103 = scmp.ne.s32.totalorder %s95, %s97
      %p104 = scmp.eq.s32.totalorder %s17, 1
      %p105 = por %p103, %p104
      %p106 = scmp.ne.s32.totalorder %s97, %s98
      %p107 = scmp.eq.s32.totalorder %s17, 0
      %p108 = por %p106, %p107
      %p109 = scmp.ne.s32.totalorder %s97, %s98
      %p110 = scmp.eq.s32.totalorder %s18, 1
      %p111 = por %p109, %p110
      %p113 = scmp.ne.s32.totalorder %s98, %s112
      %p114 = scmp.eq.s32.totalorder %s18, 0
      %p115 = por %p113, %p114
      %s116 = smul.u32 %s21, %s20
      %s117 = smul.u32 %s30, %s34
      %s118 = ssub.s32 %s19, %s38
      %s119 = ssub.s32 %s116, %s117
      %s120 = sor.u32 %s118, %s119
      %p121 = scmp.eq.s32.totalorder %s120, 0
      %s123 = sadd.s32 %s122, 1
      %s124 = scalar_select %p121, %s122, %s123
      %p127 = pneg %p121
      %p128 = scmp.eq.s32.totalorder %s12, 1
      %p129 = por %p127, %p128
      %p130 = scmp.ne.s32.totalorder %s122, %s125
      %p131 = scmp.eq.s32.totalorder %s12, 0
      %p132 = por %p130, %p131
      %p133 = scmp.ne.s32.totalorder %s122, %s125
      %p134 = scmp.eq.s32.totalorder %s17, 1
      %p135 = por %p133, %p134
      %p136 = scmp.ne.s32.totalorder %s125, %s126
      %p137 = scmp.eq.s32.totalorder %s17, 0
      %p138 = por %p136, %p137
      %p139 = scmp.ne.s32.totalorder %s125, %s126
      %p140 = scmp.eq.s32.totalorder %s18, 1
      %p141 = por %p139, %p140
      %p143 = scmp.ne.s32.totalorder %s126, %s142
      %p144 = scmp.eq.s32.totalorder %s18, 0
      %p145 = por %p143, %p144
      %p146 = scmp.le.s32.totalorder 1, %s12
      %p147 = scmp.lt.s32.totalorder %s12, 3
      %p148 = pnand %p146, %p147
      %p149 = pneg %p148
      // Predicated region
      $region9: #{tpu_custom_call.1} parent=5 // pred_check
        _
      $region10: #{tpu_custom_call.1} parent=5 // pred_check_branch
        %151 = sbr.rel (%p148) target = $region12
      $region11: #{tpu_custom_call.1} parent=5 // pred_region
        %s152 = ssub.s32 %s12, 1
        // Predicated region
        $region13: #{tpu_custom_call.1} parent=11 // pred_check
          %p153 = pneg %p57
        $region14: #{tpu_custom_call.1} parent=11 // pred_check_branch
          %155 = sbr.rel (%p153) target = $region16
        $region15: #{tpu_custom_call.1} parent=11 // pred_region
          %p156 = scmp.lt.s32.totalorder %s22, 0
          %s157 = scalar_select %p156, %s22, 0
          %s158 = smul.addr %s157, 8
          %s159 = scalar_lea.vmem %s0, %s158
        $region16: #{tpu_custom_call.1} parent=11 // pred_fallthru
          _
        // Predicated region
        $region17: #{tpu_custom_call.1} parent=11 // pred_check
          %p160 = pneg %p108
        $region18: #{tpu_custom_call.1} parent=11 // pred_check_branch
          %162 = sbr.rel (%p160) target = $region20
        $region19: #{tpu_custom_call.1} parent=11 // pred_region
          _
        $region20: #{tpu_custom_call.1} parent=11 // pred_fallthru
          _
      $region12: #{tpu_custom_call.1} parent=5 // pred_fallthru
        _
      %p163 = scmp.lt.s32.totalorder %s12, 2
      // Predicated region
      $region21: #{tpu_custom_call.1} parent=5 // pred_check
        %p164 = pneg %p163
      $region22: #{tpu_custom_call.1} parent=5 // pred_check_branch
        %166 = sbr.rel (%p164) target = $region24
      $region23: #{tpu_custom_call.1} parent=5 // pred_region
        // Predicated region
        $region25: #{tpu_custom_call.1} parent=23 // pred_check
          %p167 = pneg %p81
        $region26: #{tpu_custom_call.1} parent=23 // pred_check_branch
          %169 = sbr.rel (%p167) target = $region28
        $region27: #{tpu_custom_call.1} parent=23 // pred_region
          %s170 = ssub.s32 1, %s20
          %s171 = smul.u32 %s21, %s170
          %s172 = smul.u32 16, %s171
          %p173 = scmp.lt.s32.totalorder %s172, 15
          %s174 = scalar_select %p173, %s172, 15
          %s175 = smul.addr %s174, 8
          %s176 = scalar_lea.vmem %s1, %s175
          %s177 = ssub.s32 1, %s20
          %s178 = smul.u32 %s21, %s177
          %s179 = smul.u32 16, %s178
        $region28: #{tpu_custom_call.1} parent=23 // pred_fallthru
          _
      $region24: #{tpu_custom_call.1} parent=5 // pred_fallthru
        _
      %p180 = scmp.le.s32.totalorder 1, %s12
      %p181 = scmp.lt.s32.totalorder %s12, 3
      %p182 = pnand %p180, %p181
      %p183 = pneg %p182
      // Predicated region
      $region29: #{tpu_custom_call.1} parent=5 // pred_check
        _
      $region30: #{tpu_custom_call.1} parent=5 // pred_check_branch
        %185 = sbr.rel (%p182) target = $region32
      $region31: #{tpu_custom_call.1} parent=5 // pred_region
        %s186 = ssub.s32 %s12, 1
        %p187 = scmp.lt.s32.totalorder %s22, 0
        %s188 = scalar_select %p187, %s22, 0
        %s189 = smul.addr %s188, 8
        %s190 = scalar_lea.vmem %s0, %s189
        %p191 = pneg %p57
        %p192 = pneg %p54
        %s193 = ssub.s32 1, %s23
        %s194 = smul.u32 %s24, %s193
        %s195 = smul.u32 16, %s194
        %p196 = scmp.lt.s32.totalorder %s195, 15
        %s197 = scalar_select %p196, %s195, 15
        %s198 = smul.addr %s197, 8
        %s199 = scalar_lea.vmem %s1, %s198
        %p200 = pneg %p87
        %p201 = pneg %p84
        %p202 = pneg %p108
        %p203 = pneg %p105
        %p204 = pneg %p138
        %p205 = pneg %p135
        %s206 = sand.u32 %s125, 1
        %s207 = scalar_lea.sflag [#allocation6], %s206
        %s208 = sand.u32 %s125, 1
        %s209 = smul.addr %s208, 8
        %s210 = scalar_lea.vmem [#allocation5], %s209
        %p211 = scmp.lt.s32.totalorder %s22, 0
        %s212 = scalar_select %p211, %s22, 0
        %s213 = smul.addr %s212, 8
        %s214 = scalar_lea.vmem %s0, %s213
        %s215 = ssub.s32 1, %s23
        %s216 = smul.u32 %s24, %s215
        %s217 = smul.u32 16, %s216
        %p218 = scmp.lt.s32.totalorder %s217, 15
        %s219 = scalar_select %p218, %s217, 15
        %s220 = smul.addr %s219, 8
        %s221 = scalar_lea.vmem %s1, %s220
        %s222 = ssub.s32 1, %s23
        %s223 = smul.u32 %s24, %s222
        %s224 = smul.u32 16, %s223
        %s225 = smul.u32 %s24, %s23
        %p226 = scmp.eq.s32.totalorder %s23, 0
        %p227 = scmp.eq.s32.totalorder %s24, 0
        %p228 = pnand %p226, %p227
        %p229 = pneg %p228
        // Predicated region
        $region33: #{tpu_custom_call.1} parent=31 // pred_check
          _
        $region34: #{tpu_custom_call.1} parent=31 // pred_check_branch
          %231 = sbr.rel (%p228) target = $region36
        $region35: #{tpu_custom_call.1} parent=31 // pred_region
          %vm232 = vcmask 7168
          %233 = vst.msk [vmem:[#allocation3] sm:$0xff] %vm232, -inf
          %234 = vst.msk [vmem:[#allocation4] sm:$0xff] %vm232, 0.0
        $region36: #{tpu_custom_call.1} parent=31 // pred_fallthru
          _
        // Predicated region
        $region37: #{tpu_custom_call.1} parent=31 // pred_check
          %p235 = pneg %p226
        $region38: #{tpu_custom_call.1} parent=31 // pred_check_branch
          %237 = sbr.rel (%p235) target = $region40
        $region39: #{tpu_custom_call.1} parent=31 // pred_region
          %v238 = vld [vmem:[%s214] sm:$0xff]
          %v239 = vld [vmem:[%s221] sm:$0xff]
          %v240 = vld [vmem:[%s221 + $0x8] sm:$0xff]
          %v241 = vld [vmem:[%s221 + $0x10] sm:$0xff]
          %v242 = vld [vmem:[%s221 + $0x18] sm:$0xff]
          %v243 = vld [vmem:[%s221 + $0x20] sm:$0xff]
          %v244 = vld [vmem:[%s221 + $0x28] sm:$0xff]
          %v245 = vld [vmem:[%s221 + $0x30] sm:$0xff]
          %v246 = vld [vmem:[%s221 + $0x38] sm:$0xff]
          %v247 = vld [vmem:[%s221 + $0x40] sm:$0xff]
          %v248 = vld [vmem:[%s221 + $0x48] sm:$0xff]
          %v249 = vld [vmem:[%s221 + $0x50] sm:$0xff]
          %v250 = vld [vmem:[%s221 + $0x58] sm:$0xff]
          %v251 = vld [vmem:[%s221 + $0x60] sm:$0xff]
          %v252 = vld [vmem:[%s221 + $0x68] sm:$0xff]
          %v253 = vld [vmem:[%s221 + $0x70] sm:$0xff]
          %v254 = vld [vmem:[%s221 + $0x78] sm:$0xff]
          %s255 = scalar_lea.vmem %s2, %s24
          %v256 = vld [vmem:[%s255] sm:$0x1]
          %v258 = vlaneseq
          %v259 = vshrl.u32 %v258, 7
          %v260 = vsub.s32 0, %v259
          %v261 = vrot.slane %v256, %v260
          %vm263 = vcmask 261120
          %v265 = vsel %vm263, %v238, 0
          %v268 = vsel %vm263, %v239, 0
          %v271 = vsel %vm263, %v240, 0
          %v274 = vsel %vm263, %v241, 0
          %v277 = vsel %vm263, %v242, 0
          %v280 = vsel %vm263, %v243, 0
          %v283 = vsel %vm263, %v244, 0
          %v286 = vsel %vm263, %v245, 0
          %v289 = vsel %vm263, %v246, 0
          %v292 = vsel %vm263, %v247, 0
          %v295 = vsel %vm263, %v248, 0
          %v298 = vsel %vm263, %v249, 0
          %v301 = vsel %vm263, %v250, 0
          %v304 = vsel %vm263, %v251, 0
          %v307 = vsel %vm263, %v252, 0
          %v310 = vsel %vm263, %v253, 0
          %v313 = vsel %vm263, %v254, 0
          %315 = vmatprep.subr.mxu0 0.0
          %316 = vmatpush1.xpose.msra.mxu0 %v313
          %317 = vmatprep.subr.mxu0 0.0
          %318 = vmatpush1.xpose.msra.mxu0 %v310
          %319 = vmatprep.subr.mxu0 0.0
          %320 = vmatpush1.xpose.msra.mxu0 %v307
          %321 = vmatprep.subr.mxu0 0.0
          %322 = vmatpush1.xpose.msra.mxu0 %v304
          %323 = vmatprep.subr.mxu0 0.0
          %324 = vmatpush1.xpose.msra.mxu0 %v301
          %325 = vmatprep.subr.mxu0 0.0
          %326 = vmatpush1.xpose.msra.mxu0 %v298
          %327 = vmatprep.subr.mxu0 0.0
          %328 = vmatpush1.xpose.msra.mxu0 %v295
          %329 = vmatprep.subr.mxu0 0.0
          %330 = vmatpush1.xpose.msra.mxu0 %v292
          %331 = vmatprep.subr.mxu0 0.0
          %332 = vmatpush1.xpose.msra.mxu0 %v289
          %333 = vmatprep.subr.mxu0 0.0
          %334 = vmatpush1.xpose.msra.mxu0 %v286
          %335 = vmatprep.subr.mxu0 0.0
          %336 = vmatpush1.xpose.msra.mxu0 %v283
          %337 = vmatprep.subr.mxu0 0.0
          %338 = vmatpush1.xpose.msra.mxu0 %v280
          %339 = vmatprep.subr.mxu0 0.0
          %340 = vmatpush1.xpose.msra.mxu0 %v277
          %341 = vmatprep.subr.mxu0 0.0
          %342 = vmatpush1.xpose.msra.mxu0 %v274
          %343 = vmatprep.subr.mxu0 0.0
          %344 = vmatpush1.xpose.msra.mxu0 %v271
          %345 = vmatprep.subr.mxu0 0.0
          %346 = vmatpush1.xpose.msra.mxu0 %v268
          %347 = vmatprep.subr.mxu0 0.0
          %348 = vmatpush2.xpose.msra.mxu0 0.0
          %349 = vmatprep.subr.mxu0 0.0
          %350 = vmatpush2.xpose.msra.mxu0 0.0
          %351 = vmatprep.subr.mxu0 0.0
          %352 = vmatpush2.xpose.msra.mxu0 0.0
          %353 = vmatprep.subr.mxu0 0.0
          %354 = vmatpush2.xpose.msra.mxu0 0.0
          %355 = vmatprep.subr.mxu0 0.0
          %356 = vmatpush2.xpose.msra.mxu0 0.0
          %357 = vmatprep.subr.mxu0 0.0
          %358 = vmatpush2.xpose.msra.mxu0 0.0
          %359 = vmatprep.subr.mxu0 0.0
          %360 = vmatpush2.xpose.msra.mxu0 0.0
          %361 = vmatprep.subr.mxu0 0.0
          %362 = vmatpush2.xpose.msra.mxu0 0.0
          %363 = vmatprep.subr.mxu0 0.0
          %364 = vmatpush2.xpose.msra.mxu0 0.0
          %365 = vmatprep.subr.mxu0 0.0
          %366 = vmatpush2.xpose.msra.mxu0 0.0
          %367 = vmatprep.subr.mxu0 0.0
          %368 = vmatpush2.xpose.msra.mxu0 0.0
          %369 = vmatprep.subr.mxu0 0.0
          %370 = vmatpush2.xpose.msra.mxu0 0.0
          %371 = vmatprep.subr.mxu0 0.0
          %372 = vmatpush2.xpose.msra.mxu0 0.0
          %373 = vmatprep.subr.mxu0 0.0
          %374 = vmatpush2.xpose.msra.mxu0 0.0
          %375 = vmatprep.subr.mxu0 0.0
          %376 = vmatpush2.xpose.msra.mxu0 0.0
          %377 = vmatprep.subr.mxu0 0.0
          %378 = vmatpush2.xpose.msra.mxu0 0.0
          %379 = vmatprep.mubr.f32.mxu0 0.0
          %380 = vmatmul.mubr.f32.gmra.mxu0 %v265
          %v381 = vpop.f32.mrf.mxu0
          %v382 = vadd.f32 %v261, %v381
          %v383 = vpop.f32.mrf.mxu0
          %384 = vdwg.mxu0
          %s385 = smul.u32 %s24, 8
          %s386 = scalar_lea.vmem [#allocation2], %s385
          %387 = vst [vmem:[%s386] sm:$0xff] %v382
          %v388 = vld [vmem:[#allocation3] sm:$0xff]
          %389 = vmax.xlane.f32.xlu0 %v382
          %v390 = vpop.xlane.xlu0 %389
          %v391 = vmax.f32 %v388, %v390
          %v392 = vld [vmem:[#allocation4] sm:$0xff]
          %v393 = vsub.f32 %v388, %v391
          %v394 = vmul.f32 %v393, 1.442695
          %v395 = vpow.pop %v394
          %v396 = vmul.f32 %v392, %v395
          %398 = vset.pattern.permute.xlu0 0
          %399 = vperm.xlu0 %398, %v391
          %v400 = vpop.permute.xlu0 %399
          %v402 = vsub.f32 %v382, %v400
          %v403 = vmul.f32 %v402, 1.442695
          %v404 = vpow.pop %v403
          %405 = vadd.xlane.f32.xlu0 %v404
          %v406 = vpop.xlane.xlu0 %405
          %v407 = vadd.f32 %v396, %v406
          %vm408 = vcmask 7168
          %409 = vst.msk [vmem:[#allocation4] sm:$0xff] %vm408, %v407
          %410 = vst.msk [vmem:[#allocation3] sm:$0xff] %vm408, %v391
        $region40: #{tpu_custom_call.1} parent=31 // pred_fallthru
          _
        %p411 = scmp.eq.s32.totalorder %s23, 1
        // Predicated region
        $region41: #{tpu_custom_call.1} parent=31 // pred_check
          %p412 = pneg %p411
        $region42: #{tpu_custom_call.1} parent=31 // pred_check_branch
          %414 = sbr.rel (%p412) target = $region44
        $region43: #{tpu_custom_call.1} parent=31 // pred_region
          %s415 = smul.u32 %s24, 8
          %s416 = scalar_lea.vmem [#allocation2], %s415
          %v417 = vld [vmem:[%s416] sm:$0xff]
          %v418 = vld [vmem:[#allocation3] sm:$0xff]
          %420 = vset.pattern.permute.xlu0 0
          %421 = vperm.xlu0 %420, %v418
          %v422 = vpop.permute.xlu0 %421
          %v424 = vsub.f32 %v417, %v422
          %v425 = vld [vmem:[#allocation4] sm:$0xff]
          %v426 = vlog2.pop %v425
          %v427 = vmul.f32 %v426, 0.6931472
          %429 = vset.pattern.permute.xlu0 0
          %430 = vperm.xlu0 %429, %v427
          %v431 = vpop.permute.xlu0 %430
          %v433 = vsub.f32 %v424, %v431
          %434 = vst [vmem:[%s210] sm:$0xff] %v433
        $region44: #{tpu_custom_call.1} parent=31 // pred_fallthru
          _
        %s435 = sand.u32 %s125, 1
        %s436 = scalar_lea.sflag [#allocation6], %s435
        %s437 = sand.u32 %s125, 1
        %s438 = smul.addr %s437, 8
        %s439 = scalar_lea.vmem [#allocation5], %s438
        // Predicated region
        $region45: #{tpu_custom_call.1} parent=31 // pred_check
          %p440 = pneg %p135
        $region46: #{tpu_custom_call.1} parent=31 // pred_check_branch
          %442 = sbr.rel (%p440) target = $region48
        $region47: #{tpu_custom_call.1} parent=31 // pred_region
          %s443 = smul.u32 %s24, %s23
          %s445 = ssub.s32 128, 128
          %446 = vsyncadd %s436, %s445
          %s447 = sadd.s32 %s443, %s22
          %s448 = smul.addr %s447, 128
          %s449 = scalar_lea.hbm %s3, %s448
          %s451 = sshll.u32 %s439, 4
          %s452 = int_to_ptr.vmem [resolvable:$true] %s451
          %454 = dma.vmem_to_hbm [thread:$0]  %s452, 128, %s449, %s436
        $region48: #{tpu_custom_call.1} parent=31 // pred_fallthru
          _
      $region32: #{tpu_custom_call.1} parent=5 // pred_fallthru
        _
      %p455 = scmp.le.s32.totalorder 2, %s12
      // Predicated region
      $region49: #{tpu_custom_call.1} parent=5 // pred_check
        %p456 = pneg %p455
      $region50: #{tpu_custom_call.1} parent=5 // pred_check_branch
        %458 = sbr.rel (%p456) target = $region52
      $region51: #{tpu_custom_call.1} parent=5 // pred_region
        %s459 = ssub.s32 %s12, 2
        // Predicated region
        $region53: #{tpu_custom_call.1} parent=51 // pred_check
          %p460 = pneg %p141
        $region54: #{tpu_custom_call.1} parent=51 // pred_check_branch
          %462 = sbr.rel (%p460) target = $region56
        $region55: #{tpu_custom_call.1} parent=51 // pred_region
          %s463 = sand.u32 %s126, 1
          %s464 = scalar_lea.sflag [#allocation6], %s463
          %s465 = sand.u32 %s126, 1
          %s466 = smul.addr %s465, 8
          %s467 = scalar_lea.vmem [#allocation5], %s466
          %468 = dma.done %s464, 128
        $region56: #{tpu_custom_call.1} parent=51 // pred_fallthru
          _
      $region52: #{tpu_custom_call.1} parent=5 // pred_fallthru
        _
    $region6: #{tpu_custom_call.1} parent=1 // loop_footer
      %s16 = sadd.s32 1, %s12
    $region7: #{tpu_custom_call.1} parent=1 // loop_footer_branch
      %11 = sbr.rel target = $region3
    $region8: #{tpu_custom_call.1} parent=1 // loop_exit
      _
    %469 = vsyncpa [#allocation6], 1
    %s470 = scalar_lea.sflag [#allocation6], 1
    %471 = vsyncpa %s470, 1

</llo_original>
